<compile_context>
chip_gen: v7x
topology: tpu7x:2x2x1
jax: 0.10.0
libtpu: 0.0.40
codegen_flags: <defaults>
</compile_context>

<pallas_src>
import functools
import math

import jax
import jax.numpy as jnp
from jax.experimental import pallas as pl
from jax.experimental.pallas import tpu as pltpu

_INV_SQRT2 = 0.7071067811865476


# ---------------------------------------------------------------------------
# Kernel
# ---------------------------------------------------------------------------
def _bottleneck_kernel(x_ref, w1_ref, b1_ref, w2_ref, b2_ref, o_ref, acc_ref,
                       *, matmul_dtype, approximate_gelu):
    # x_ref:  (tm, thin)            w1_ref: (thin, tw)   b1_ref: (1, tw) f32
    # w2_ref: (tw, thin)            b2_ref: (1, thin) f32
    # o_ref:  (tm, thin)            acc_ref: (tm, thin) f32 scratch
    # Grid is (row_tiles, wide_tiles); the wide axis is a reduction for the
    # second matmul, accumulated in f32 and finalized on the last step.
    w_step = pl.program_id(1)

    @pl.when(w_step == 0)
    def _():
        acc_ref[...] = jnp.zeros_like(acc_ref)

    x = x_ref[...].astype(matmul_dtype)          # no-op when x already matches
    h = jnp.dot(x, w1_ref[...], preferred_element_type=jnp.float32) + b1_ref[...]

    if approximate_gelu:
        # tanh-GELU: transcendental runs on the EUP slot (co-issues ~free on
        # v6e/v7x, where the f32 erf polynomial would saturate the VALU).
        h = jax.nn.gelu(h, approximate=True)
    else:
        # Exact erf-GELU in f32 -- matches torch.nn.GELU() default numerics.
        h = 0.5 * h * (1.0 + jax.lax.erf(h * _INV_SQRT2))

    acc_ref[...] += jnp.dot(h.astype(matmul_dtype), w2_ref[...],
                            preferred_element_type=jnp.float32)

    @pl.when(w_step == pl.num_programs(1) - 1)
    def _():
        o_ref[...] = (acc_ref[...] + b2_ref[...]).astype(o_ref.dtype)


# ---------------------------------------------------------------------------
# Build-time helpers
# ---------------------------------------------------------------------------
def _vmem_capacity_bytes():
    """Per-TensorCore VMEM capacity (generation-aware); conservative fallback."""
    try:
        cap = int(getattr(pltpu.get_tpu_info(), "vmem_capacity_bytes", 0))
        if cap > 0:
            return cap
    except Exception:
        pass
    return 64 * 1024 * 1024   # v7x per-TC size: safe lower bound for all gens


_SINGLE_BUFFER_SUPPORTED = None


def _single_buffer_weights_supported():
    """Build-time feature probe: can grid-constant weight blocks be
    single-buffered via pipeline_mode=pl.Buffered(1)?

    The probe lowers+compiles a tiny dummy kernel once (cached). A failure here
    only disables the feature (default double-buffering); it can never mask an
    error in the real kernel, which is built exactly once with no try/except.
    """
    global _SINGLE_BUFFER_SUPPORTED
    if _SINGLE_BUFFER_SUPPORTED is not None:
        return _SINGLE_BUFFER_SUPPORTED

    supported = False
    if hasattr(pl, "Buffered"):
        try:
            spec = pl.BlockSpec((8, 128), lambda i: (0, 0),
                                pipeline_mode=pl.Buffered(1))

            def _probe(a_ref, o_ref):
                o_ref[...] = a_ref[...] + 1.0

            probe_call = pl.pallas_call(
                _probe,
                out_shape=jax.ShapeDtypeStruct((16, 128), jnp.float32),
                grid_spec=pltpu.PrefetchScalarGridSpec(
                    num_scalar_prefetch=0,
                    grid=(2,),
                    in_specs=[spec],
                    out_specs=pl.BlockSpec((8, 128), lambda i: (i, 0)),
                ),
            )
            jax.jit(probe_call).lower(
                jax.ShapeDtypeStruct((8, 128), jnp.float32)).compile()
            supported = True
        except Exception:
            # Tiny probe only: any failure just means "feature unavailable".
            supported = False

    _SINGLE_BUFFER_SUPPORTED = supported
    return supported


def _round_up(v, mult):
    return -(-v // mult) * mult


def _pick_tile_w(wide, limit):
    """Largest multiple-of-128 divisor of `wide` that is <= limit; else `wide`.

    Divisibility is required: a partial tile on the wide (reduction) axis would
    let out-of-bounds garbage enter the accumulation.
    """
    found = None
    for d in range(128, wide + 1, 128):
        if wide % d == 0 and d <= limit:
            found = d
    return found if found is not None else wide


def _choose_tiles(m, thin, wide, x_bytes, out_bytes, mm_bytes, *,
                  max_tile_m, max_tile_w, vmem_budget, weights_single_buffered):
    wbuf = 1 if weights_single_buffered else 2

    def weight_bytes(tw):
        return wbuf * ((thin * tw + tw * thin) * mm_bytes + (tw + thin) * 4)

    # Keep weights fully resident when they fit in ~half the budget; otherwise
    # stream W1/W2 chunks over the wide axis (accumulator path).
    limit = wide if max_tile_w is None else max_tile_w
    tile_w = _pick_tile_w(wide, limit)
    while weight_bytes(tile_w) > vmem_budget // 2 and tile_w > 128:
        smaller = _pick_tile_w(wide, tile_w - 128)
        if smaller >= tile_w:
            break
        tile_w = smaller
    # TODO(synk): also tile the thin dimension (extra reduction axis) for models
    # where even a single (thin, 128) weight chunk does not fit VMEM.

    def tile_m_bytes(tm):
        return (2 * tm * thin * x_bytes          # x tiles (double-buffered)
                + 2 * tm * thin * out_bytes      # out tiles (double-buffered)
                + tm * thin * 4                  # f32 accumulator scratch
                + tm * tile_w * 4                # f32 hidden activations
                + tm * tile_w * mm_bytes)        # matmul-dtype copy of hidden

    tile_m = min(max_tile_m, max(8, _round_up(m, 8)))
    tile_m -= tile_m % 8
    while tile_m > 8 and weight_bytes(tile_w) + tile_m_bytes(tile_m) > vmem_budget:
        tile_m -= 8

    # Guarantee >=2 row steps so the "parallel" grid axis can shard across both
    # TensorCores on v7x (megacore); negligible cost on v5e/v6e.
    if m > 8 and pl.cdiv(m, tile_m) < 2:
        tile_m = max(8, _round_up(pl.cdiv(m, 2), 8))

    est = weight_bytes(tile_w) + tile_m_bytes(tile_m)
    return tile_m, tile_w, est


# ---------------------------------------------------------------------------
# Public wrapper
# ---------------------------------------------------------------------------
def bottleneck_block(x, w1, b1, w2, b2, *, out_dtype=None,
                     matmul_dtype=jnp.bfloat16, approximate_gelu=False,
                     max_tile_m=2048, max_tile_w=None):
    """Fused Linear(thin->wide) -> GELU -> Linear(wide->thin).

    x: (..., thin). w1: (thin, wide), b1: (wide,), w2: (wide, thin), b2: (thin,).
    matmul_dtype=float32 gives torch-like f32 matmul numerics; bfloat16 (default)
    feeds the MXU natively with f32 accumulation.
    """
    thin = x.shape[-1]
    wide = w1.shape[1]
    assert w1.shape == (thin, wide) and w2.shape == (wide, thin)
    out_dtype = x.dtype if out_dtype is None else out_dtype
    lead_shape = x.shape[:-1]
    x2d = x.reshape(-1, thin)
    m = x2d.shape[0]

    mm_dtype = jnp.dtype(matmul_dtype)
    vmem_cap = _vmem_capacity_bytes()
    vmem_budget = int(vmem_cap * 0.40)        # tile-sizing budget; headroom left
    single_buf = _single_buffer_weights_supported()

    tile_m, tile_w, est_vmem = _choose_tiles(
        m, thin, wide,
        jnp.dtype(x.dtype).itemsize, jnp.dtype(out_dtype).itemsize,
        mm_dtype.itemsize,
        max_tile_m=max_tile_m, max_tile_w=max_tile_w,
        vmem_budget=vmem_budget, weights_single_buffered=single_buf)

    m_steps = pl.cdiv(m, tile_m)
    w_steps = pl.cdiv(wide, tile_w)
    grid = (m_steps, w_steps)   # no pre-padding of x; the partial row tile is masked

    # Weights cast once to the matmul dtype; biases stay f32 for the add.
    w1_c = w1.astype(mm_dtype)
    w2_c = w2.astype(mm_dtype)
    b1_2d = b1.astype(jnp.float32).reshape(1, wide)
    b2_2d = b2.astype(jnp.float32).reshape(1, thin)

    comp_kwargs = dict(dimension_semantics=("parallel", "arbitrary"))
    if est_vmem > 12 * 1024 * 1024:
        # Generation-aware scoped-VMEM limit: stay well below physical VMEM
        # (64 MiB/TC on v7x, 128 MiB on v5e/v6e).
        comp_kwargs["vmem_limit_bytes"] = min(int(est_vmem * 3 // 2),
                                              int(vmem_cap * 3 // 4))

    # Single-buffer only grid-constant blocks (weights are constant only when
    # they are fully resident, i.e. w_steps == 1; b2 is always constant).
    buf1 = dict(pipeline_mode=pl.Buffered(1)) if single_buf else {}
    w_kwargs = buf1 if w_steps == 1 else {}
    b2_kwargs = buf1

    weight_stream_bytes = ((w1_c.size + w2_c.size) * mm_dtype.itemsize
                           * (m_steps if w_steps > 1 else 1))
    cost = pl.CostEstimate(
        flops=2 * 2 * m * thin * wide,                           # two matmuls
        transcendentals=(m * wide if approximate_gelu else 0),   # erf is a VALU polynomial
        bytes_accessed=(x2d.size * jnp.dtype(x.dtype).itemsize
                        + m * thin * jnp.dtype(out_dtype).itemsize
                        + weight_stream_bytes
                        + (b1_2d.size + b2_2d.size) * 4),
    )

    kernel = functools.partial(_bottleneck_kernel,
                               matmul_dtype=mm_dtype,
                               approximate_gelu=approximate_gelu)

    out2d = pl.pallas_call(
        kernel,
        out_shape=jax.ShapeDtypeStruct((m, thin), out_dtype),
        grid_spec=pltpu.PrefetchScalarGridSpec(
            num_scalar_prefetch=0,
            grid=grid,
            in_specs=[
                pl.BlockSpec((tile_m, thin), lambda i, w: (i, 0)),              # x row tile
                pl.BlockSpec((thin, tile_w), lambda i, w: (0, w), **w_kwargs),  # W1 chunk
                pl.BlockSpec((1, tile_w), lambda i, w: (0, w), **w_kwargs),     # b1 chunk
                pl.BlockSpec((tile_w, thin), lambda i, w: (w, 0), **w_kwargs),  # W2 chunk
                pl.BlockSpec((1, thin), lambda i, w: (0, 0), **b2_kwargs),      # b2
            ],
            out_specs=pl.BlockSpec((tile_m, thin), lambda i, w: (i, 0)),
            scratch_shapes=[pltpu.VMEM((tile_m, thin), jnp.float32)],
        ),
        compiler_params=pltpu.CompilerParams(**comp_kwargs),
        cost_estimate=cost,
    )(x2d, w1_c, b1_2d, w2_c, b2_2d)

    return out2d.reshape(*lead_shape, thin)


# ---------------------------------------------------------------------------
# Params / reference / demo
# ---------------------------------------------------------------------------
def init_bottleneck_params(key, thin_dim, wide_dim, dtype=jnp.float32):
    """Deterministic init mirroring nn.Linear's default (uniform +/- 1/sqrt(fan_in))."""
    k1, k2, k3, k4 = jax.random.split(key, 4)
    bound1 = 1.0 / math.sqrt(thin_dim)
    bound2 = 1.0 / math.sqrt(wide_dim)
    w1 = jax.random.uniform(k1, (thin_dim, wide_dim), dtype, -bound1, bound1)
    b1 = jax.random.uniform(k2, (wide_dim,), dtype, -bound1, bound1)
    w2 = jax.random.uniform(k3, (wide_dim, thin_dim), dtype, -bound2, bound2)
    b2 = jax.random.uniform(k4, (thin_dim,), dtype, -bound2, bound2)
    return w1, b1, w2, b2


def _reference(x, w1, b1, w2, b2, *, matmul_dtype, approximate_gelu=False):
    cast = lambda a: a.astype(matmul_dtype)
    h = jnp.dot(cast(x), cast(w1), preferred_element_type=jnp.float32) \
        + b1.astype(jnp.float32)
    if approximate_gelu:
        h = jax.nn.gelu(h, approximate=True)
    else:
        h = 0.5 * h * (1.0 + jax.lax.erf(h * _INV_SQRT2))
    return jnp.dot(cast(h), cast(w2), preferred_element_type=jnp.float32) \
        + b2.astype(jnp.float32)


if __name__ == "__main__":
    key = jax.random.PRNGKey(0)
    kx, kp = jax.random.split(key)

    # Small but lane-/MXU-aligned demo shapes (feature dims multiples of 128).
    batch, seq, thin_dim, wide_dim = 2, 64, 128, 256
    x = jax.random.normal(kx, (batch, seq, thin_dim), jnp.float32)
    w1, b1, w2, b2 = init_bottleneck_params(kp, thin_dim, wide_dim)

    ref_bf16 = _reference(x, w1, b1, w2, b2, matmul_dtype=jnp.bfloat16)
    ref_f32 = _reference(x, w1, b1, w2, b2, matmul_dtype=jnp.float32)

    # 1) Default path: bf16 MXU matmuls (f32 acc), exact erf-GELU, f32 I/O.
    out = jax.block_until_ready(bottleneck_block(x, w1, b1, w2, b2))
    assert out.shape == x.shape, (out.shape, x.shape)
    assert jnp.allclose(out, ref_bf16, atol=1e-3, rtol=1e-3), "mismatch vs bf16-matmul reference"
    assert jnp.allclose(out, ref_f32, atol=3e-2, rtol=3e-2), "mismatch vs f32 reference"

    # 2) Closer-to-torch f32-matmul path (follows the backend's default f32
    #    matmul precision, hence the moderate tolerance).
    out_f32 = jax.block_until_ready(
        bottleneck_block(x, w1, b1, w2, b2, matmul_dtype=jnp.float32))
    assert jnp.allclose(out_f32, ref_f32, atol=1e-2, rtol=1e-2), "mismatch on f32-matmul path"

    # 3) Wide-dim streamed/accumulator path (used automatically when weights
    #    exceed ~half the VMEM budget); forced here via max_tile_w.
    out_tiled = jax.block_until_ready(
        bottleneck_block(x, w1, b1, w2, b2, max_tile_w=128))
    assert jnp.allclose(out_tiled, ref_bf16, atol=1e-3, rtol=1e-3), "mismatch on wide-tiled path"

    # 4) bf16 I/O + tanh-GELU: the HBM- and VALU-friendly configuration.
    x_bf16 = x.astype(jnp.bfloat16)
    out_bf16 = jax.block_until_ready(
        bottleneck_block(x_bf16, w1, b1, w2, b2, approximate_gelu=True))
    ref_approx = _reference(x_bf16, w1, b1, w2, b2,
                            matmul_dtype=jnp.bfloat16, approximate_gelu=True)
    assert out_bf16.dtype == jnp.bfloat16
    assert jnp.allclose(out_bf16.astype(jnp.float32), ref_approx,
                        atol=2e-2, rtol=2e-2), "mismatch on bf16-I/O path"

    print("KERNEL_OK")
</pallas_src>

<mosaic_0001>
module attributes {stable_mosaic.version = 11 : i64} {
  func.func @_bottleneck_kernel(%arg0: i32, %arg1: i32, %arg2: memref<64x128xf32, #tpu.memory_space<vmem>>, %arg3: memref<128x256xbf16, #tpu.memory_space<vmem>>, %arg4: memref<1x256xf32, #tpu.memory_space<vmem>>, %arg5: memref<256x128xbf16, #tpu.memory_space<vmem>>, %arg6: memref<1x128xf32, #tpu.memory_space<vmem>>, %arg7: memref<64x128xf32, #tpu.memory_space<vmem>>, %arg8: memref<64x128xf32, #tpu.memory_space<vmem>>) attributes {dimension_semantics = [#tpu.dimension_semantics<parallel>, #tpu.dimension_semantics<arbitrary>], iteration_bounds = array<i64: 2, 1>, scalar_prefetch = 0 : i64, scratch_operands = 1 : i64, tpu.core_type = #tpu.core_type<tc>, window_params = [{transform_indices = @transform_0, window_bounds = array<i64: 64, 128>}, {transform_indices = @transform_1, window_bounds = array<i64: 128, 256>}, {transform_indices = @transform_2, window_bounds = array<i64: 1, 256>}, {transform_indices = @transform_3, window_bounds = array<i64: 256, 128>}, {pipeline_mode = #tpu.pipeline_mode<synchronous>, transform_indices = @transform_4, window_bounds = array<i64: 1, 128>}, {transform_indices = @transform_5, window_bounds = array<i64: 64, 128>}]} {
    %c0_i32 = arith.constant 0 : i32
    %0 = arith.cmpi eq, %arg1, %c0_i32 : i32
    %1 = arith.extui %0 : i1 to i32
    %c0_i32_0 = arith.constant 0 : i32
    %2 = arith.cmpi ne, %1, %c0_i32_0 : i32
    scf.if %2 {
      %cst_18 = arith.constant 0.000000e+00 : f32
      %27 = vector.broadcast %cst_18 : f32 to vector<64x128xf32>
      %c0_19 = arith.constant 0 : index
      %c0_20 = arith.constant 0 : index
      %28 = vector.load %arg8[%c0_19, %c0_20] : memref<64x128xf32, #tpu.memory_space<vmem>>, vector<64x128xf32>
      tpu.vector_store %arg8[%c0_19, %c0_20], %27 {strides = array<i32>} : memref<64x128xf32, #tpu.memory_space<vmem>>, vector<64x128xf32>,
    } else {
    }
    %c0 = arith.constant 0 : index
    %c0_1 = arith.constant 0 : index
    %3 = vector.load %arg2[%c0, %c0_1] : memref<64x128xf32, #tpu.memory_space<vmem>>, vector<64x128xf32>
    %4 = arith.truncf %3 : vector<64x128xf32> to vector<64x128xbf16>
    %c0_2 = arith.constant 0 : index
    %c0_3 = arith.constant 0 : index
    %5 = vector.load %arg3[%c0_2, %c0_3] : memref<128x256xbf16, #tpu.memory_space<vmem>>, vector<128x256xbf16>
    %cst = arith.constant dense<0.000000e+00> : vector<64x256xf32>
    %6 = tpu.matmul %4, %5, %cst {dimension_numbers = #tpu.dot_dimension_numbers<[1], [0], [0], [1], [0, 0, 1, 1], [], []>} : vector<64x128xbf16>, vector<128x256xbf16>, vector<64x256xf32> -> vector<64x256xf32>
    %c0_4 = arith.constant 0 : index
    %c0_5 = arith.constant 0 : index
    %7 = vector.load %arg4[%c0_4, %c0_5] : memref<1x256xf32, #tpu.memory_space<vmem>>, vector<1x256xf32>
    %8 = vector.broadcast %7 : vector<1x256xf32> to vector<64x256xf32>
    %9 = arith.addf %6, %8 : vector<64x256xf32>
    %cst_6 = arith.constant 5.000000e-01 : f32
    %10 = vector.broadcast %cst_6 : f32 to vector<64x256xf32>
    %11 = arith.mulf %10, %9 : vector<64x256xf32>
    %cst_7 = arith.constant 0.707106769 : f32
    %12 = vector.broadcast %cst_7 : f32 to vector<64x256xf32>
    %13 = arith.mulf %9, %12 : vector<64x256xf32>
    %14 = math.erf %13 : vector<64x256xf32>
    %cst_8 = arith.constant 1.000000e+00 : f32
    %15 = vector.broadcast %cst_8 : f32 to vector<64x256xf32>
    %16 = arith.addf %15, %14 : vector<64x256xf32>
    %17 = arith.mulf %11, %16 : vector<64x256xf32>
    %c0_9 = arith.constant 0 : index
    %c0_10 = arith.constant 0 : index
    %18 = vector.load %arg8[%c0_9, %c0_10] : memref<64x128xf32, #tpu.memory_space<vmem>>, vector<64x128xf32>
    %19 = arith.truncf %17 : vector<64x256xf32> to vector<64x256xbf16>
    %c0_11 = arith.constant 0 : index
    %c0_12 = arith.constant 0 : index
    %20 = vector.load %arg5[%c0_11, %c0_12] : memref<256x128xbf16, #tpu.memory_space<vmem>>, vector<256x128xbf16>
    %cst_13 = arith.constant dense<0.000000e+00> : vector<64x128xf32>
    %21 = tpu.matmul %19, %20, %cst_13 {dimension_numbers = #tpu.dot_dimension_numbers<[1], [0], [0], [1], [0, 0, 1, 1], [], []>} : vector<64x256xbf16>, vector<256x128xbf16>, vector<64x128xf32> -> vector<64x128xf32>
    %22 = arith.addf %18, %21 : vector<64x128xf32>
    %c0_14 = arith.constant 0 : index
    %c0_15 = arith.constant 0 : index
    %23 = vector.load %arg8[%c0_14, %c0_15] : memref<64x128xf32, #tpu.memory_space<vmem>>, vector<64x128xf32>
    tpu.vector_store %arg8[%c0_14, %c0_15], %22 {strides = array<i32>} : memref<64x128xf32, #tpu.memory_space<vmem>>, vector<64x128xf32>,
    %c0_i32_16 = arith.constant 0 : i32
    %24 = arith.cmpi eq, %arg1, %c0_i32_16 : i32
    %25 = arith.extui %24 : i1 to i32
    %c0_i32_17 = arith.constant 0 : i32
    %26 = arith.cmpi ne, %25, %c0_i32_17 : i32
    scf.if %26 {
      %c0_18 = arith.constant 0 : index
      %c0_19 = arith.constant 0 : index
      %27 = vector.load %arg8[%c0_18, %c0_19] : memref<64x128xf32, #tpu.memory_space<vmem>>, vector<64x128xf32>
      %c0_20 = arith.constant 0 : index
      %c0_21 = arith.constant 0 : index
      %28 = vector.load %arg6[%c0_20, %c0_21] : memref<1x128xf32, #tpu.memory_space<vmem>>, vector<1x128xf32>
      %29 = vector.broadcast %28 : vector<1x128xf32> to vector<64x128xf32>
      %30 = arith.addf %27, %29 : vector<64x128xf32>
      %c0_22 = arith.constant 0 : index
      %c0_23 = arith.constant 0 : index
      %31 = vector.load %arg7[%c0_22, %c0_23] : memref<64x128xf32, #tpu.memory_space<vmem>>, vector<64x128xf32>
      tpu.vector_store %arg7[%c0_22, %c0_23], %30 {strides = array<i32>} : memref<64x128xf32, #tpu.memory_space<vmem>>, vector<64x128xf32>,
    } else {
    }
    return
  }
  func.func @transform_0(%arg0: i32, %arg1: i32) -> (i32, i32) {
    %c0_i32 = arith.constant 0 : i32
    %c0_i32_0 = arith.constant 0 : i32
    return %arg0, %c0_i32 : i32, i32
  }
  func.func @transform_1(%arg0: i32, %arg1: i32) -> (i32, i32) {
    %c0_i32 = arith.constant 0 : i32
    %c0_i32_0 = arith.constant 0 : i32
    return %c0_i32, %arg1 : i32, i32
  }
  func.func @transform_2(%arg0: i32, %arg1: i32) -> (i32, i32) {
    %c0_i32 = arith.constant 0 : i32
    %c0_i32_0 = arith.constant 0 : i32
    return %c0_i32, %arg1 : i32, i32
  }
  func.func @transform_3(%arg0: i32, %arg1: i32) -> (i32, i32) {
    %c0_i32 = arith.constant 0 : i32
    %c0_i32_0 = arith.constant 0 : i32
    return %arg1, %c0_i32 : i32, i32
  }
  func.func @transform_4(%arg0: i32, %arg1: i32) -> (i32, i32) {
    %c0_i32 = arith.constant 0 : i32
    %c0_i32_0 = arith.constant 0 : i32
    %c0_i32_1 = arith.constant 0 : i32
    return %c0_i32, %c0_i32_0 : i32, i32
  }
  func.func @transform_5(%arg0: i32, %arg1: i32) -> (i32, i32) {
    %c0_i32 = arith.constant 0 : i32
    %c0_i32_0 = arith.constant 0 : i32
    return %arg0, %c0_i32 : i32, i32
  }
}

</mosaic_0001>

<llo_original>
// kernel: tpu_custom_call.1
$region0: #{tpu_custom_call.1}
  #allocation0 [shape = 'u32[]', space=smem, size = 0x4, offset = 0x4, fixed_abs, tag = 'smem constant byte address 0x4 - core index']
  #allocation1 [shape = 'u32[144,128]{1,0:T(1,128)}', space=vmem, size = 0x12000, scoped, tag = 'internal scratch']
  #allocation2 [shape = 'f32[64,128]{1,0:T(8,128)}', space=vmem, size = 0x8000, scoped, tag = 'scratch operand']
  %s0 = inlined_call_operand.hbm [shape: f32[128,128], index: 0, kind: input, shape index: {}]
  %s1 = inlined_call_operand.hbm [shape: bf16[128,256], index: 1, kind: input, shape index: {}]
  %s2 = inlined_call_operand.vmem [shape: f32[1,256], index: 2, kind: input, shape index: {}]
  %s3 = inlined_call_operand.hbm [shape: bf16[256,128], index: 3, kind: input, shape index: {}]
  %s4 = inlined_call_operand.vmem [shape: f32[1,128], index: 4, kind: input, shape index: {}]
  %s5 = inlined_call_operand.hbm [shape: f32[128,128], index: 5, kind: output, shape index: {}]
  %s6 = sld [smem:[#allocation0]]
  $region73: #{tpu_custom_call.1} parent=0
    _
  %s8 = ssub.s32 1, %s6
  %s9 = scalar_select 0, %s8, %s6
  $region1: #{tpu_custom_call.1} parent=0
    #allocation3 [shape = 'u8[65536]{0}', space=vmem, size = 0x10000, scoped, tag = 'input window, operand 0']
    #allocation4 [shape = 's32[2]{0}', space=sflag, size = 0x8, scoped, tag = 'scoped memory for tpu_custom_call.1']
    #allocation5 [shape = 's32[2]{0}', space=sflag, size = 0x8, scoped, tag = 'scoped memory for tpu_custom_call.1']
    #allocation6 [shape = 'u8[65536]{0}', space=vmem, size = 0x10000, scoped, tag = 'input window, operand 1, single buffered']
    #allocation7 [shape = 's32[1]{0}', space=sflag, size = 0x4, scoped, tag = 'scoped memory for tpu_custom_call.1']
    #allocation8 [shape = 'u8[65536]{0}', space=vmem, size = 0x10000, scoped, tag = 'input window, operand 3, single buffered']
    #allocation9 [shape = 'u8[65536]{0}', space=vmem, size = 0x10000, scoped, tag = 'output window, operand 0']
    %10 = vsyncpa [#allocation4], 0
    %s11 = scalar_lea.sflag [#allocation4], 1
    %12 = vsyncpa %s11, 0
    %13 = vsyncpa [#allocation7], 0
    %14 = vsyncpa [#allocation5], 0
    %s15 = scalar_lea.sflag [#allocation5], 1
    %16 = vsyncpa %s15, 0
    loop: start=0, step=1, limit=4
    $region2: #{tpu_custom_call.1} parent=1 // loop_pre_header
      _
    $region3: #{tpu_custom_call.1} parent=1 // loop_header
      %s18 = sphi 0, %s22
      %p19 = scmp.ge.s32.totalorder %s18, 4
      %s25 = sphi 0, %s37
      %s26 = sphi 0, %s33
      %s27 = sphi 0, %s25
      %s28 = sphi 0, %s26
      %s29 = sphi 0, %s27
      %s30 = sphi 0, %s28
      %s40 = sphi 0, %s42
      %s43 = sphi 0, %s40
      %s44 = sphi 0, %s43
      %s60 = sphi 0, %s44
      %s66 = sphi 0, %s68
      %s69 = sphi 0, %s66
      %s70 = sphi 0, %s69
      %s86 = sphi 0, %s70
      %s92 = sphi 0, %s94
      %s95 = sphi 0, %s92
      %s96 = sphi 0, %s95
      %s112 = sphi 0, %s96
      %s118 = sphi 0, %s120
      %s121 = sphi 0, %s118
      %s122 = sphi 0, %s121
      %s138 = sphi 0, %s122
      %s142 = sphi 0, %s142
      %s144 = sphi 0, %s142
      %s145 = sphi 0, %s144
      %s159 = sphi 0, %s145
      %s165 = sphi 0, %s167
      %s168 = sphi 0, %s165
      %s169 = sphi 0, %s168
      %s185 = sphi 0, %s169
    $region4: #{tpu_custom_call.1} parent=1 // loop_header_branch
      %21 = sbr.rel (%p19) target = $region8
    $region5: #{tpu_custom_call.1} parent=1 // loop_body
      %s23 = ssub.s32 %s18, 1
      %s24 = ssub.s32 %s18, 2
      %s31 = sadd.s32 1, %s26
      %p32 = scmp.ge.s32.totalorder %s31, 1
      %s33 = scalar_select %p32, 0, %s31
      %s34 = sadd.s32 1, %s25
      %s35 = scalar_select %p32, %s34, %s25
      %p36 = scmp.ge.s32.totalorder %s35, 2
      %s37 = scalar_select %p36, 0, %s35
      %s38 = ssub.s32 %s25, %s37
      %p39 = scmp.eq.s32.totalorder %s38, 0
      %s41 = sadd.s32 %s40, 1
      %s42 = scalar_select %p39, %s40, %s41
      %p45 = pneg %p39
      %p46 = scmp.eq.s32.totalorder %s18, 1
      %p47 = por %p45, %p46
      %p48 = scmp.ne.s32.totalorder %s40, %s43
      %p49 = scmp.eq.s32.totalorder %s18, 0
      %p50 = por %p48, %p49
      %p51 = scmp.ne.s32.totalorder %s40, %s43
      %p52 = scmp.eq.s32.totalorder %s23, 1
      %p53 = por %p51, %p52
      %p54 = scmp.ne.s32.totalorder %s43, %s44
      %p55 = scmp.eq.s32.totalorder %s23, 0
      %p56 = por %p54, %p55
      %p57 = scmp.ne.s32.totalorder %s43, %s44
      %p58 = scmp.eq.s32.totalorder %s24, 1
      %p59 = por %p57, %p58
      %p61 = scmp.ne.s32.totalorder %s44, %s60
      %p62 = scmp.eq.s32.totalorder %s24, 0
      %p63 = por %p61, %p62
      %s64 = ssub.s32 %s26, %s33
      %p65 = scmp.eq.s32.totalorder %s64, 0
      %s67 = sadd.s32 %s66, 1
      %s68 = scalar_select %p65, %s66, %s67
      %p71 = pneg %p65
      %p72 = scmp.eq.s32.totalorder %s18, 1
      %p73 = por %p71, %p72
      %p74 = scmp.ne.s32.totalorder %s66, %s69
      %p75 = scmp.eq.s32.totalorder %s18, 0
      %p76 = por %p74, %p75
      %p77 = scmp.ne.s32.totalorder %s66, %s69
      %p78 = scmp.eq.s32.totalorder %s23, 1
      %p79 = por %p77, %p78
      %p80 = scmp.ne.s32.totalorder %s69, %s70
      %p81 = scmp.eq.s32.totalorder %s23, 0
      %p82 = por %p80, %p81
      %p83 = scmp.ne.s32.totalorder %s69, %s70
      %p84 = scmp.eq.s32.totalorder %s24, 1
      %p85 = por %p83, %p84
      %p87 = scmp.ne.s32.totalorder %s70, %s86
      %p88 = scmp.eq.s32.totalorder %s24, 0
      %p89 = por %p87, %p88
      %s90 = ssub.s32 %s26, %s33
      %p91 = scmp.eq.s32.totalorder %s90, 0
      %s93 = sadd.s32 %s92, 1
      %s94 = scalar_select %p91, %s92, %s93
      %p97 = pneg %p91
      %p98 = scmp.eq.s32.totalorder %s18, 1
      %p99 = por %p97, %p98
      %p100 = scmp.ne.s32.totalorder %s92, %s95
      %p101 = scmp.eq.s32.totalorder %s18, 0
      %p102 = por %p100, %p101
      %p103 = scmp.ne.s32.totalorder %s92, %s95
      %p104 = scmp.eq.s32.totalorder %s23, 1
      %p105 = por %p103, %p104
      %p106 = scmp.ne.s32.totalorder %s95, %s96
      %p107 = scmp.eq.s32.totalorder %s23, 0
      %p108 = por %p106, %p107
      %p109 = scmp.ne.s32.totalorder %s95, %s96
      %p110 = scmp.eq.s32.totalorder %s24, 1
      %p111 = por %p109, %p110
      %p113 = scmp.ne.s32.totalorder %s96, %s112
      %p114 = scmp.eq.s32.totalorder %s24, 0
      %p115 = por %p113, %p114
      %s116 = ssub.s32 %s26, %s33
      %p117 = scmp.eq.s32.totalorder %s116, 0
      %s119 = sadd.s32 %s118, 1
      %s120 = scalar_select %p117, %s118, %s119
      %p123 = pneg %p117
      %p124 = scmp.eq.s32.totalorder %s18, 1
      %p125 = por %p123, %p124
      %p126 = scmp.ne.s32.totalorder %s118, %s121
      %p127 = scmp.eq.s32.totalorder %s18, 0
      %p128 = por %p126, %p127
      %p129 = scmp.ne.s32.totalorder %s118, %s121
      %p130 = scmp.eq.s32.totalorder %s23, 1
      %p131 = por %p129, %p130
      %p132 = scmp.ne.s32.totalorder %s121, %s122
      %p133 = scmp.eq.s32.totalorder %s23, 0
      %p134 = por %p132, %p133
      %p135 = scmp.ne.s32.totalorder %s121, %s122
      %p136 = scmp.eq.s32.totalorder %s24, 1
      %p137 = por %p135, %p136
      %p139 = scmp.ne.s32.totalorder %s122, %s138
      %p140 = scmp.eq.s32.totalorder %s24, 0
      %p141 = por %p139, %p140
      %s143 = sadd.s32 %s142, 1
      %p146 = scmp.eq.s32.totalorder %s18, 1
      %p147 = scmp.ne.s32.totalorder %s142, %s144
      %p148 = scmp.eq.s32.totalorder %s18, 0
      %p149 = por %p147, %p148
      %p150 = scmp.ne.s32.totalorder %s142, %s144
      %p151 = scmp.eq.s32.totalorder %s23, 1
      %p152 = por %p150, %p151
      %p153 = scmp.ne.s32.totalorder %s144, %s145
      %p154 = scmp.eq.s32.totalorder %s23, 0
      %p155 = por %p153, %p154
      %p156 = scmp.ne.s32.totalorder %s144, %s145
      %p157 = scmp.eq.s32.totalorder %s24, 1
      %p158 = por %p156, %p157
      %p160 = scmp.ne.s32.totalorder %s145, %s159
      %p161 = scmp.eq.s32.totalorder %s24, 0
      %p162 = por %p160, %p161
      %s163 = ssub.s32 %s25, %s37
      %p164 = scmp.eq.s32.totalorder %s163, 0
      %s166 = sadd.s32 %s165, 1
      %s167 = scalar_select %p164, %s165, %s166
      %p170 = pneg %p164
      %p171 = scmp.eq.s32.totalorder %s18, 1
      %p172 = por %p170, %p171
      %p173 = scmp.ne.s32.totalorder %s165, %s168
      %p174 = scmp.eq.s32.totalorder %s18, 0
      %p175 = por %p173, %p174
      %p176 = scmp.ne.s32.totalorder %s165, %s168
      %p177 = scmp.eq.s32.totalorder %s23, 1
      %p178 = por %p176, %p177
      %p179 = scmp.ne.s32.totalorder %s168, %s169
      %p180 = scmp.eq.s32.totalorder %s23, 0
      %p181 = por %p179, %p180
      %p182 = scmp.ne.s32.totalorder %s168, %s169
      %p183 = scmp.eq.s32.totalorder %s24, 1
      %p184 = por %p182, %p183
      %p186 = scmp.ne.s32.totalorder %s169, %s185
      %p187 = scmp.eq.s32.totalorder %s24, 0
      %p188 = por %p186, %p187
      %p189 = scmp.le.s32.totalorder 1, %s18
      %p190 = scmp.lt.s32.totalorder %s18, 3
      %p191 = pnand %p189, %p190
      %p192 = pneg %p191
      // Predicated region
      $region9: #{tpu_custom_call.1} parent=5 // pred_check
        _
      $region10: #{tpu_custom_call.1} parent=5 // pred_check_branch
        %194 = sbr.rel (%p191) target = $region12
      $region11: #{tpu_custom_call.1} parent=5 // pred_region
        %s195 = ssub.s32 %s18, 1
        // Predicated region
        $region13: #{tpu_custom_call.1} parent=11 // pred_check
          %p196 = pneg %p82
        $region14: #{tpu_custom_call.1} parent=11 // pred_check_branch
          %198 = sbr.rel (%p196) target = $region16
        $region15: #{tpu_custom_call.1} parent=11 // pred_region
          %s199 = smul.u32 2, %s28
          %s201 = ssub.s32 2048, 2048
          %202 = vsyncadd [#allocation7], %s201
          %s203 = smul.addr %s199, 64
          %s204 = scalar_lea.hbm %s1, %s203
          %s205 = sshll.u32 [#allocation6], 4
          %s206 = int_to_ptr.vmem [resolvable:$true] %s205
          %211 = dma.hbm_to_vmem [thread:$0]  %s204, 2048, %s206, [#allocation7], 128, 128, 8
        $region16: #{tpu_custom_call.1} parent=11 // pred_fallthru
          _
        // Predicated region
        $region17: #{tpu_custom_call.1} parent=11 // pred_check
          %p212 = pneg %p108
        $region18: #{tpu_custom_call.1} parent=11 // pred_check_branch
          %214 = sbr.rel (%p212) target = $region20
        $region19: #{tpu_custom_call.1} parent=11 // pred_region
          %s215 = smul.u32 2, %s28
          %p216 = scmp.lt.s32.totalorder %s215, 1
          %s217 = scalar_select %p216, %s215, 1
          %s218 = scalar_lea.vmem %s2, %s217
          %s219 = smul.u32 2, %s28
        $region20: #{tpu_custom_call.1} parent=11 // pred_fallthru
          _
        // Predicated region
        $region21: #{tpu_custom_call.1} parent=11 // pred_check
          %p220 = pneg %p134
        $region22: #{tpu_custom_call.1} parent=11 // pred_check_branch
          %222 = sbr.rel (%p220) target = $region24
        $region23: #{tpu_custom_call.1} parent=11 // pred_region
          %s223 = smul.u32 32, %s28
          %s225 = ssub.s32 2048, 2048
          %226 = vsyncadd [#allocation7], %s225
          %s227 = smul.addr %s223, 64
          %s228 = scalar_lea.hbm %s3, %s227
          %s229 = sshll.u32 [#allocation8], 4
          %s230 = int_to_ptr.vmem [resolvable:$true] %s229
          %235 = dma.hbm_to_vmem [thread:$0]  %s228, 2048, %s230, [#allocation7], 64, 64, 4
        $region24: #{tpu_custom_call.1} parent=11 // pred_fallthru
          _
        // Predicated region
        $region25: #{tpu_custom_call.1} parent=11 // pred_check
          %p236 = pneg %p155
        $region26: #{tpu_custom_call.1} parent=11 // pred_check_branch
          %238 = sbr.rel (%p236) target = $region28
        $region27: #{tpu_custom_call.1} parent=11 // pred_region
          _
        $region28: #{tpu_custom_call.1} parent=11 // pred_fallthru
          _
      $region12: #{tpu_custom_call.1} parent=5 // pred_fallthru
        _
      %p239 = scmp.lt.s32.totalorder %s18, 2
      // Predicated region
      $region29: #{tpu_custom_call.1} parent=5 // pred_check
        %p240 = pneg %p239
      $region30: #{tpu_custom_call.1} parent=5 // pred_check_branch
        %242 = sbr.rel (%p240) target = $region32
      $region31: #{tpu_custom_call.1} parent=5 // pred_region
        // Predicated region
        $region33: #{tpu_custom_call.1} parent=31 // pred_check
          %p243 = pneg %p50
        $region34: #{tpu_custom_call.1} parent=31 // pred_check_branch
          %245 = sbr.rel (%p243) target = $region36
        $region35: #{tpu_custom_call.1} parent=31 // pred_region
          %s246 = sand.u32 %s40, 1
          %s247 = scalar_lea.sflag [#allocation4], %s246
          %s248 = sand.u32 %s40, 1
          %s249 = smul.addr %s248, 64
          %s250 = scalar_lea.vmem [#allocation3], %s249
          %s251 = smul.u32 8, %s25
          %s253 = ssub.s32 1024, 1024
          %254 = vsyncadd %s247, %s253
          %s255 = smul.addr %s251, 128
          %s256 = scalar_lea.hbm %s0, %s255
          %s257 = sshll.u32 %s250, 4
          %s258 = int_to_ptr.vmem [resolvable:$true] %s257
          %263 = dma.hbm_to_vmem [thread:$0]  %s256, 1024, %s258, %s247, 128, 128, 8
        $region36: #{tpu_custom_call.1} parent=31 // pred_fallthru
          _
      $region32: #{tpu_custom_call.1} parent=5 // pred_fallthru
        _
      %p264 = scmp.le.s32.totalorder 1, %s18
      %p265 = scmp.lt.s32.totalorder %s18, 3
      %p266 = pnand %p264, %p265
      %p267 = pneg %p266
      // Predicated region
      $region37: #{tpu_custom_call.1} parent=5 // pred_check
        _
      $region38: #{tpu_custom_call.1} parent=5 // pred_check_branch
        %269 = sbr.rel (%p266) target = $region40
      $region39: #{tpu_custom_call.1} parent=5 // pred_region
        %s270 = ssub.s32 %s18, 1
        %s271 = sand.u32 %s43, 1
        %s272 = scalar_lea.sflag [#allocation4], %s271
        %s273 = sand.u32 %s43, 1
        %s274 = smul.addr %s273, 64
        %s275 = scalar_lea.vmem [#allocation3], %s274
        // Predicated region
        $region41: #{tpu_custom_call.1} parent=39 // pred_check
          %p276 = pneg %p56
        $region42: #{tpu_custom_call.1} parent=39 // pred_check_branch
          %278 = sbr.rel (%p276) target = $region44
        $region43: #{tpu_custom_call.1} parent=39 // pred_region
          %279 = dma.done %s272, 1024
        $region44: #{tpu_custom_call.1} parent=39 // pred_fallthru
          _
        // Predicated region
        $region45: #{tpu_custom_call.1} parent=39 // pred_check
          %p280 = pneg %p82
        $region46: #{tpu_custom_call.1} parent=39 // pred_check_branch
          %282 = sbr.rel (%p280) target = $region48
        $region47: #{tpu_custom_call.1} parent=39 // pred_region
          %283 = dma.done [#allocation7], 2048
        $region48: #{tpu_custom_call.1} parent=39 // pred_fallthru
          _
        // Predicated region
        $region49: #{tpu_custom_call.1} parent=39 // pred_check
          %p284 = pneg %p134
        $region50: #{tpu_custom_call.1} parent=39 // pred_check_branch
          %286 = sbr.rel (%p284) target = $region52
        $region51: #{tpu_custom_call.1} parent=39 // pred_region
          %287 = dma.done [#allocation7], 2048
        $region52: #{tpu_custom_call.1} parent=39 // pred_fallthru
          _
        %s288 = sand.u32 %s43, 1
        %s289 = scalar_lea.sflag [#allocation4], %s288
        %s290 = sand.u32 %s43, 1
        %s291 = smul.addr %s290, 64
        %s292 = scalar_lea.vmem [#allocation3], %s291
        %p293 = pneg %p56
        %p294 = pneg %p53
        %p295 = pneg %p82
        %p296 = pneg %p79
        %s297 = smul.u32 2, %s28
        %p298 = scmp.lt.s32.totalorder %s297, 1
        %s299 = scalar_select %p298, %s297, 1
        %s300 = scalar_lea.vmem %s2, %s299
        %p301 = pneg %p108
        %p302 = pneg %p105
        %p303 = pneg %p134
        %p304 = pneg %p131
        %p305 = pneg %p155
        %p306 = pneg %p152
        %p307 = pneg %p181
        %p308 = pneg %p178
        %s309 = sand.u32 %s168, 1
        %s310 = scalar_lea.sflag [#allocation5], %s309
        %s311 = sand.u32 %s168, 1
        %s312 = smul.addr %s311, 64
        %s313 = scalar_lea.vmem [#allocation9], %s312
        %s314 = smul.u32 8, %s27
        %s315 = smul.u32 2, %s28
        %s316 = smul.u32 2, %s28
        %p317 = scmp.lt.s32.totalorder %s316, 1
        %s318 = scalar_select %p317, %s316, 1
        %s319 = scalar_lea.vmem %s2, %s318
        %s320 = smul.u32 2, %s28
        %s321 = smul.u32 32, %s28
        %s322 = smul.u32 8, %s27
        %p324 = scmp.eq.s32.totalorder %s28, 0
        // Predicated region
        $region53: #{tpu_custom_call.1} parent=39 // pred_check
          %p325 = pneg %p324
        $region54: #{tpu_custom_call.1} parent=39 // pred_check_branch
          %327 = sbr.rel (%p325) target = $region56
        $region55: #{tpu_custom_call.1} parent=39 // pred_region
          %328 = vst [vmem:[#allocation2] sm:$0xff] 0.0
          %329 = vst [vmem:[#allocation2 + $0x8] sm:$0xff] 0.0
          %330 = vst [vmem:[#allocation2 + $0x10] sm:$0xff] 0.0
          %331 = vst [vmem:[#allocation2 + $0x18] sm:$0xff] 0.0
          %332 = vst [vmem:[#allocation2 + $0x20] sm:$0xff] 0.0
          %333 = vst [vmem:[#allocation2 + $0x28] sm:$0xff] 0.0
          %334 = vst [vmem:[#allocation2 + $0x30] sm:$0xff] 0.0
          %335 = vst [vmem:[#allocation2 + $0x38] sm:$0xff] 0.0
        $region56: #{tpu_custom_call.1} parent=39 // pred_fallthru
          _
        %v336 = vld [vmem:[%s275] sm:$0xff]
        %v337 = vld [vmem:[%s275 + $0x8] sm:$0xff]
        %v338 = vld [vmem:[%s275 + $0x10] sm:$0xff]
        %v339 = vld [vmem:[%s275 + $0x18] sm:$0xff]
        %v340 = vld [vmem:[%s275 + $0x20] sm:$0xff]
        %v341 = vld [vmem:[%s275 + $0x28] sm:$0xff]
        %v342 = vld [vmem:[%s275 + $0x30] sm:$0xff]
        %v343 = vld [vmem:[%s275 + $0x38] sm:$0xff]
        %v344 = vpack.c.bf16 %v337, %v336
        %v345 = vpack.c.bf16 %v339, %v338
        %v346 = vpack.c.bf16 %v341, %v340
        %v347 = vpack.c.bf16 %v343, %v342
        %v348 = vld [vmem:[#allocation6] sm:$0xff]
        %v349 = vld [vmem:[#allocation6 + $0x8] sm:$0xff]
        %v350 = vld [vmem:[#allocation6 + $0x10] sm:$0xff]
        %v351 = vld [vmem:[#allocation6 + $0x18] sm:$0xff]
        %v352 = vld [vmem:[#allocation6 + $0x20] sm:$0xff]
        %v353 = vld [vmem:[#allocation6 + $0x28] sm:$0xff]
        %v354 = vld [vmem:[#allocation6 + $0x30] sm:$0xff]
        %v355 = vld [vmem:[#allocation6 + $0x38] sm:$0xff]
        %v356 = vld [vmem:[#allocation6 + $0x40] sm:$0xff]
        %v357 = vld [vmem:[#allocation6 + $0x48] sm:$0xff]
        %v358 = vld [vmem:[#allocation6 + $0x50] sm:$0xff]
        %v359 = vld [vmem:[#allocation6 + $0x58] sm:$0xff]
        %v360 = vld [vmem:[#allocation6 + $0x60] sm:$0xff]
        %v361 = vld [vmem:[#allocation6 + $0x68] sm:$0xff]
        %v362 = vld [vmem:[#allocation6 + $0x70] sm:$0xff]
        %v363 = vld [vmem:[#allocation6 + $0x78] sm:$0xff]
        %v364 = vld [vmem:[%s319] sm:$0x3]
        %v366 = vlaneseq
        %v367 = vshrl.u32 %v366, 7
        %v368 = vsub.s32 0, %v367
        %v369 = vrot.slane %v364, %v368
        %v370 = vlaneseq
        %v371 = vshrl.u32 %v370, 7
        %v372 = vsub.s32 1, %v371
        %v373 = vrot.slane %v364, %v372
        %v392 = vunpack.c.l.b16 %v348
        %v393 = vunpack.c.h.b16 %v348
        %v394 = vunpack.c.l.b16 %v349
        %v395 = vunpack.c.h.b16 %v349
        %v396 = vunpack.c.l.b16 %v350
        %v397 = vunpack.c.h.b16 %v350
        %v398 = vunpack.c.l.b16 %v351
        %v399 = vunpack.c.h.b16 %v351
        %v400 = vunpack.c.l.b16 %v352
        %v401 = vunpack.c.h.b16 %v352
        %v402 = vunpack.c.l.b16 %v353
        %v403 = vunpack.c.h.b16 %v353
        %v404 = vunpack.c.l.b16 %v354
        %v405 = vunpack.c.h.b16 %v354
        %v406 = vunpack.c.l.b16 %v355
        %v407 = vunpack.c.h.b16 %v355
        %v408 = vunpack.c.l.b16 %v356
        %v409 = vunpack.c.h.b16 %v356
        %v410 = vunpack.c.l.b16 %v357
        %v411 = vunpack.c.h.b16 %v357
        %v412 = vunpack.c.l.b16 %v358
        %v413 = vunpack.c.h.b16 %v358
        %v414 = vunpack.c.l.b16 %v359
        %v415 = vunpack.c.h.b16 %v359
        %v416 = vunpack.c.l.b16 %v360
        %v417 = vunpack.c.h.b16 %v360
        %v418 = vunpack.c.l.b16 %v361
        %v419 = vunpack.c.h.b16 %v361
        %v420 = vunpack.c.l.b16 %v362
        %v421 = vunpack.c.h.b16 %v362
        %v422 = vunpack.c.l.b16 %v363
        %v423 = vunpack.c.h.b16 %v363
        %v424 = vpack.c.b16 %v394, %v392
        %v425 = vpack.c.b16 %v395, %v393
        %v426 = vpack.c.b16 %v398, %v396
        %v427 = vpack.c.b16 %v399, %v397
        %v428 = vpack.c.b16 %v402, %v400
        %v429 = vpack.c.b16 %v403, %v401
        %v430 = vpack.c.b16 %v406, %v404
        %v431 = vpack.c.b16 %v407, %v405
        %v432 = vpack.c.b16 %v410, %v408
        %v433 = vpack.c.b16 %v411, %v409
        %v434 = vpack.c.b16 %v414, %v412
        %v435 = vpack.c.b16 %v415, %v413
        %v436 = vpack.c.b16 %v418, %v416
        %v437 = vpack.c.b16 %v419, %v417
        %v438 = vpack.c.b16 %v422, %v420
        %v439 = vpack.c.b16 %v423, %v421
        %456 = vmatprep.subr.bf16.mxu0 %v425
        %457 = vmatpush1.bf16.msra.mxu0 %v424
        %458 = vmatprep.subr.bf16.mxu0 %v427
        %459 = vmatpush1.bf16.msra.mxu0 %v426
        %460 = vmatprep.subr.bf16.mxu0 %v429
        %461 = vmatpush1.bf16.msra.mxu0 %v428
        %462 = vmatprep.subr.bf16.mxu0 %v431
        %463 = vmatpush1.bf16.msra.mxu0 %v430
        %464 = vmatprep.subr.bf16.mxu0 %v433
        %465 = vmatpush1.bf16.msra.mxu0 %v432
        %466 = vmatprep.subr.bf16.mxu0 %v435
        %467 = vmatpush1.bf16.msra.mxu0 %v434
        %468 = vmatprep.subr.bf16.mxu0 %v437
        %469 = vmatpush1.bf16.msra.mxu0 %v436
        %470 = vmatprep.subr.bf16.mxu0 %v439
        %471 = vmatpush1.bf16.msra.mxu0 %v438
        %472 = vmatprep.subr.bf16.mxu0 0
        %473 = vmatpush1.bf16.msra.mxu0 0
        %474 = vmatprep.subr.bf16.mxu0 0
        %475 = vmatpush1.bf16.msra.mxu0 0
        %476 = vmatprep.subr.bf16.mxu0 0
        %477 = vmatpush1.bf16.msra.mxu0 0
        %478 = vmatprep.subr.bf16.mxu0 0
        %479 = vmatpush1.bf16.msra.mxu0 0
        %480 = vmatprep.subr.bf16.mxu0 0
        %481 = vmatpush1.bf16.msra.mxu0 0
        %482 = vmatprep.subr.bf16.mxu0 0
        %483 = vmatpush1.bf16.msra.mxu0 0
        %484 = vmatprep.subr.bf16.mxu0 0
        %485 = vmatpush1.bf16.msra.mxu0 0
        %486 = vmatprep.subr.bf16.mxu0 0
        %487 = vmatpush1.bf16.msra.mxu0 0
        %488 = vmatprep.mubr.bf16.mxu0 0
        %489 = vmatmul.mubr.bf16.gmra.mrb[0].mxu0 %v344
        %v490 = vpop.f32.mrb[0].mxu0
        %v491 = vadd.f32 %v369, %v490
        %v492 = vpop.f32.mrb[0].mxu0
        %v493 = vadd.f32 %v373, %v492
        %v494 = vpop.f32.mrb[0].mxu0
        %v495 = vadd.f32 %v369, %v494
        %v496 = vpop.f32.mrb[0].mxu0
        %v497 = vadd.f32 %v373, %v496
        %498 = vmatprep.mubr.bf16.mxu0 0
        %499 = vmatmul.mubr.bf16.gmra.mrb[0].mxu0 %v345
        %v500 = vpop.f32.mrb[0].mxu0
        %v501 = vadd.f32 %v369, %v500
        %v502 = vpop.f32.mrb[0].mxu0
        %v503 = vadd.f32 %v373, %v502
        %v504 = vpop.f32.mrb[0].mxu0
        %v505 = vadd.f32 %v369, %v504
        %v506 = vpop.f32.mrb[0].mxu0
        %v507 = vadd.f32 %v373, %v506
        %508 = vmatprep.mubr.bf16.mxu0 0
        %509 = vmatmul.mubr.bf16.gmra.mrb[0].mxu0 %v346
        %v510 = vpop.f32.mrb[0].mxu0
        %v511 = vadd.f32 %v369, %v510
        %v512 = vpop.f32.mrb[0].mxu0
        %v513 = vadd.f32 %v373, %v512
        %v514 = vpop.f32.mrb[0].mxu0
        %v515 = vadd.f32 %v369, %v514
        %v516 = vpop.f32.mrb[0].mxu0
        %v517 = vadd.f32 %v373, %v516
        %518 = vmatprep.mubr.bf16.mxu0 0
        %519 = vmatmul.mubr.bf16.gmra.mrb[0].mxu0 %v347
        %v520 = vpop.f32.mrb[0].mxu0
        %v521 = vadd.f32 %v369, %v520
        %v522 = vpop.f32.mrb[0].mxu0
        %v523 = vadd.f32 %v373, %v522
        %v524 = vpop.f32.mrb[0].mxu0
        %v525 = vadd.f32 %v369, %v524
        %v526 = vpop.f32.mrb[0].mxu0
        %v527 = vadd.f32 %v373, %v526
        %528 = vdwg.mxu0
        %v529 = vmul.f32 %v491, 0.5
        %v530 = vmul.f32 %v493, 0.5
        %v531 = vmul.f32 %v495, 0.5
        %v532 = vmul.f32 %v497, 0.5
        %v533 = vmul.f32 %v501, 0.5
        %v534 = vmul.f32 %v503, 0.5
        %v535 = vmul.f32 %v505, 0.5
        %v536 = vmul.f32 %v507, 0.5
        %v537 = vmul.f32 %v511, 0.5
        %v538 = vmul.f32 %v513, 0.5
        %v539 = vmul.f32 %v515, 0.5
        %v540 = vmul.f32 %v517, 0.5
        %v541 = vmul.f32 %v521, 0.5
        %v542 = vmul.f32 %v523, 0.5
        %v543 = vmul.f32 %v525, 0.5
        %v544 = vmul.f32 %v527, 0.5
        %v545 = vmul.f32 %v491, 0.70710677
        %v546 = vmul.f32 %v493, 0.70710677
        %v547 = vmul.f32 %v495, 0.70710677
        %v548 = vmul.f32 %v497, 0.70710677
        %v549 = vmul.f32 %v501, 0.70710677
        %v550 = vmul.f32 %v503, 0.70710677
        %v551 = vmul.f32 %v505, 0.70710677
        %v552 = vmul.f32 %v507, 0.70710677
        %v553 = vmul.f32 %v511, 0.70710677
        %v554 = vmul.f32 %v513, 0.70710677
        %v555 = vmul.f32 %v515, 0.70710677
        %v556 = vmul.f32 %v517, 0.70710677
        %v557 = vmul.f32 %v521, 0.70710677
        %v558 = vmul.f32 %v523, 0.70710677
        %v559 = vmul.f32 %v525, 0.70710677
        %v560 = vmul.f32 %v527, 0.70710677
        %v561 = verf.f32.pop %v545
        %v562 = verf.f32.pop %v546
        %v563 = verf.f32.pop %v547
        %v564 = verf.f32.pop %v548
        %v565 = verf.f32.pop %v549
        %v566 = verf.f32.pop %v550
        %v567 = verf.f32.pop %v551
        %v568 = verf.f32.pop %v552
        %v569 = verf.f32.pop %v553
        %v570 = verf.f32.pop %v554
        %v571 = verf.f32.pop %v555
        %v572 = verf.f32.pop %v556
        %v573 = verf.f32.pop %v557
        %v574 = verf.f32.pop %v558
        %v575 = verf.f32.pop %v559
        %v576 = verf.f32.pop %v560
        %v577 = vadd.f32 %v561, 1.0
        %v578 = vadd.f32 %v562, 1.0
        %v579 = vadd.f32 %v563, 1.0
        %v580 = vadd.f32 %v564, 1.0
        %v581 = vadd.f32 %v565, 1.0
        %v582 = vadd.f32 %v566, 1.0
        %v583 = vadd.f32 %v567, 1.0
        %v584 = vadd.f32 %v568, 1.0
        %v585 = vadd.f32 %v569, 1.0
        %v586 = vadd.f32 %v570, 1.0
        %v587 = vadd.f32 %v571, 1.0
        %v588 = vadd.f32 %v572, 1.0
        %v589 = vadd.f32 %v573, 1.0
        %v590 = vadd.f32 %v574, 1.0
        %v591 = vadd.f32 %v575, 1.0
        %v592 = vadd.f32 %v576, 1.0
        %v593 = vmul.f32 %v529, %v577
        %v594 = vmul.f32 %v530, %v578
        %v595 = vmul.f32 %v531, %v579
        %v596 = vmul.f32 %v532, %v580
        %v597 = vmul.f32 %v533, %v581
        %v598 = vmul.f32 %v534, %v582
        %v599 = vmul.f32 %v535, %v583
        %v600 = vmul.f32 %v536, %v584
        %v601 = vmul.f32 %v537, %v585
        %v602 = vmul.f32 %v538, %v586
        %v603 = vmul.f32 %v539, %v587
        %v604 = vmul.f32 %v540, %v588
        %v605 = vmul.f32 %v541, %v589
        %v606 = vmul.f32 %v542, %v590
        %v607 = vmul.f32 %v543, %v591
        %v608 = vmul.f32 %v544, %v592
        %v609 = vld [vmem:[#allocation2] sm:$0xff]
        %v610 = vld [vmem:[#allocation2 + $0x8] sm:$0xff]
        %v611 = vld [vmem:[#allocation2 + $0x10] sm:$0xff]
        %v612 = vld [vmem:[#allocation2 + $0x18] sm:$0xff]
        %v613 = vld [vmem:[#allocation2 + $0x20] sm:$0xff]
        %v614 = vld [vmem:[#allocation2 + $0x28] sm:$0xff]
        %v615 = vld [vmem:[#allocation2 + $0x30] sm:$0xff]
        %v616 = vld [vmem:[#allocation2 + $0x38] sm:$0xff]
        %v617 = vpack.c.bf16 %v595, %v593
        %v618 = vpack.c.bf16 %v596, %v594
        %v619 = vpack.c.bf16 %v599, %v597
        %v620 = vpack.c.bf16 %v600, %v598
        %v621 = vpack.c.bf16 %v603, %v601
        %v622 = vpack.c.bf16 %v604, %v602
        %v623 = vpack.c.bf16 %v607, %v605
        %v624 = vpack.c.bf16 %v608, %v606
        %v625 = vld [vmem:[#allocation8] sm:$0xf]
        %v626 = vld [vmem:[#allocation8 + $0x4] sm:$0xf]
        %v627 = vld [vmem:[#allocation8 + $0x8] sm:$0xf]
        %v628 = vld [vmem:[#allocation8 + $0xc] sm:$0xf]
        %v629 = vld [vmem:[#allocation8 + $0x10] sm:$0xf]
        %v630 = vld [vmem:[#allocation8 + $0x14] sm:$0xf]
        %v631 = vld [vmem:[#allocation8 + $0x18] sm:$0xf]
        %v632 = vld [vmem:[#allocation8 + $0x1c] sm:$0xf]
        %v633 = vld [vmem:[#allocation8 + $0x20] sm:$0xf]
        %v634 = vld [vmem:[#allocation8 + $0x24] sm:$0xf]
        %v635 = vld [vmem:[#allocation8 + $0x28] sm:$0xf]
        %v636 = vld [vmem:[#allocation8 + $0x2c] sm:$0xf]
        %v637 = vld [vmem:[#allocation8 + $0x30] sm:$0xf]
        %v638 = vld [vmem:[#allocation8 + $0x34] sm:$0xf]
        %v639 = vld [vmem:[#allocation8 + $0x38] sm:$0xf]
        %v640 = vld [vmem:[#allocation8 + $0x3c] sm:$0xf]
        %v641 = vld [vmem:[#allocation8 + $0x40] sm:$0xf]
        %v642 = vld [vmem:[#allocation8 + $0x44] sm:$0xf]
        %v643 = vld [vmem:[#allocation8 + $0x48] sm:$0xf]
        %v644 = vld [vmem:[#allocation8 + $0x4c] sm:$0xf]
        %v645 = vld [vmem:[#allocation8 + $0x50] sm:$0xf]
        %v646 = vld [vmem:[#allocation8 + $0x54] sm:$0xf]
        %v647 = vld [vmem:[#allocation8 + $0x58] sm:$0xf]
        %v648 = vld [vmem:[#allocation8 + $0x5c] sm:$0xf]
        %v649 = vld [vmem:[#allocation8 + $0x60] sm:$0xf]
        %v650 = vld [vmem:[#allocation8 + $0x64] sm:$0xf]
        %v651 = vld [vmem:[#allocation8 + $0x68] sm:$0xf]
        %v652 = vld [vmem:[#allocation8 + $0x6c] sm:$0xf]
        %v653 = vld [vmem:[#allocation8 + $0x70] sm:$0xf]
        %v654 = vld [vmem:[#allocation8 + $0x74] sm:$0xf]
        %v655 = vld [vmem:[#allocation8 + $0x78] sm:$0xf]
        %v656 = vld [vmem:[#allocation8 + $0x7c] sm:$0xf]
        %v689 = vunpack.c.l.b16 %v625
        %v690 = vunpack.c.l.b16 %v626
        %v691 = vunpack.c.l.b16 %v627
        %v692 = vunpack.c.l.b16 %v628
        %v693 = vunpack.c.l.b16 %v629
        %v694 = vunpack.c.l.b16 %v630
        %v695 = vunpack.c.l.b16 %v631
        %v696 = vunpack.c.l.b16 %v632
        %v697 = vunpack.c.l.b16 %v633
        %v698 = vunpack.c.l.b16 %v634
        %v699 = vunpack.c.l.b16 %v635
        %v700 = vunpack.c.l.b16 %v636
        %v701 = vunpack.c.l.b16 %v637
        %v702 = vunpack.c.l.b16 %v638
        %v703 = vunpack.c.l.b16 %v639
        %v704 = vunpack.c.l.b16 %v640
        %v705 = vunpack.c.l.b16 %v641
        %v706 = vunpack.c.l.b16 %v642
        %v707 = vunpack.c.l.b16 %v643
        %v708 = vunpack.c.l.b16 %v644
        %v709 = vunpack.c.l.b16 %v645
        %v710 = vunpack.c.l.b16 %v646
        %v711 = vunpack.c.l.b16 %v647
        %v712 = vunpack.c.l.b16 %v648
        %v713 = vunpack.c.l.b16 %v649
        %v714 = vunpack.c.l.b16 %v650
        %v715 = vunpack.c.l.b16 %v651
        %v716 = vunpack.c.l.b16 %v652
        %v717 = vunpack.c.l.b16 %v653
        %v718 = vunpack.c.l.b16 %v654
        %v719 = vunpack.c.l.b16 %v655
        %v720 = vunpack.c.l.b16 %v656
        %v721 = vpack.c.b16 %v690, %v689
        %v722 = vpack.c.b16 %v692, %v691
        %v723 = vpack.c.b16 %v694, %v693
        %v724 = vpack.c.b16 %v696, %v695
        %v725 = vpack.c.b16 %v698, %v697
        %v726 = vpack.c.b16 %v700, %v699
        %v727 = vpack.c.b16 %v702, %v701
        %v728 = vpack.c.b16 %v704, %v703
        %v729 = vpack.c.b16 %v706, %v705
        %v730 = vpack.c.b16 %v708, %v707
        %v731 = vpack.c.b16 %v710, %v709
        %v732 = vpack.c.b16 %v712, %v711
        %v733 = vpack.c.b16 %v714, %v713
        %v734 = vpack.c.b16 %v716, %v715
        %v735 = vpack.c.b16 %v718, %v717
        %v736 = vpack.c.b16 %v720, %v719
        %753 = vmatprep.subr.bf16.mxu0 0
        %754 = vmatpush1.bf16.msra.mxu0 %v721
        %755 = vmatprep.subr.bf16.mxu0 0
        %756 = vmatpush1.bf16.msra.mxu0 %v722
        %757 = vmatprep.subr.bf16.mxu0 0
        %758 = vmatpush1.bf16.msra.mxu0 %v723
        %759 = vmatprep.subr.bf16.mxu0 0
        %760 = vmatpush1.bf16.msra.mxu0 %v724
        %761 = vmatprep.subr.bf16.mxu0 0
        %762 = vmatpush1.bf16.msra.mxu0 %v725
        %763 = vmatprep.subr.bf16.mxu0 0
        %764 = vmatpush1.bf16.msra.mxu0 %v726
        %765 = vmatprep.subr.bf16.mxu0 0
        %766 = vmatpush1.bf16.msra.mxu0 %v727
        %767 = vmatprep.subr.bf16.mxu0 0
        %768 = vmatpush1.bf16.msra.mxu0 %v728
        %769 = vmatprep.subr.bf16.mxu0 0
        %770 = vmatpush1.bf16.msra.mxu0 %v729
        %771 = vmatprep.subr.bf16.mxu0 0
        %772 = vmatpush1.bf16.msra.mxu0 %v730
        %773 = vmatprep.subr.bf16.mxu0 0
        %774 = vmatpush1.bf16.msra.mxu0 %v731
        %775 = vmatprep.subr.bf16.mxu0 0
        %776 = vmatpush1.bf16.msra.mxu0 %v732
        %777 = vmatprep.subr.bf16.mxu0 0
        %778 = vmatpush1.bf16.msra.mxu0 %v733
        %779 = vmatprep.subr.bf16.mxu0 0
        %780 = vmatpush1.bf16.msra.mxu0 %v734
        %781 = vmatprep.subr.bf16.mxu0 0
        %782 = vmatpush1.bf16.msra.mxu0 %v735
        %783 = vmatprep.subr.bf16.mxu0 0
        %784 = vmatpush1.bf16.msra.mxu0 %v736
        %785 = vmatprep.mubr.bf16.mxu0 %v618
        %786 = vmatmul.mubr.bf16.gmra.mrb[0].mxu0 %v617
        %v787 = vpop.f32.mrb[0].mxu0
        %v788 = vadd.f32 0.0, %v787
        %v789 = vpop.f32.mrb[0].mxu0
        %v790 = vpop.f32.mrb[0].mxu0
        %v791 = vadd.f32 0.0, %v790
        %v792 = vpop.f32.mrb[0].mxu0
        %793 = vmatprep.mubr.bf16.mxu0 %v620
        %794 = vmatmul.mubr.bf16.gmra.mrb[0].mxu0 %v619
        %v795 = vpop.f32.mrb[0].mxu0
        %v796 = vadd.f32 0.0, %v795
        %v797 = vpop.f32.mrb[0].mxu0
        %v798 = vpop.f32.mrb[0].mxu0
        %v799 = vadd.f32 0.0, %v798
        %v800 = vpop.f32.mrb[0].mxu0
        %801 = vmatprep.mubr.bf16.mxu0 %v622
        %802 = vmatmul.mubr.bf16.gmra.mrb[0].mxu0 %v621
        %v803 = vpop.f32.mrb[0].mxu0
        %v804 = vadd.f32 0.0, %v803
        %v805 = vpop.f32.mrb[0].mxu0
        %v806 = vpop.f32.mrb[0].mxu0
        %v807 = vadd.f32 0.0, %v806
        %v808 = vpop.f32.mrb[0].mxu0
        %809 = vmatprep.mubr.bf16.mxu0 %v624
        %810 = vmatmul.mubr.bf16.gmra.mrb[0].mxu0 %v623
        %v811 = vpop.f32.mrb[0].mxu0
        %v812 = vadd.f32 0.0, %v811
        %v813 = vpop.f32.mrb[0].mxu0
        %v814 = vpop.f32.mrb[0].mxu0
        %v815 = vadd.f32 0.0, %v814
        %v816 = vpop.f32.mrb[0].mxu0
        %817 = vdwg.mxu0
        %v818 = vadd.f32 %v609, %v788
        %v819 = vadd.f32 %v610, %v791
        %v820 = vadd.f32 %v611, %v796
        %v821 = vadd.f32 %v612, %v799
        %v822 = vadd.f32 %v613, %v804
        %v823 = vadd.f32 %v614, %v807
        %v824 = vadd.f32 %v615, %v812
        %v825 = vadd.f32 %v616, %v815
        %826 = vst [vmem:[#allocation2] sm:$0xff] %v818
        %827 = vst [vmem:[#allocation2 + $0x8] sm:$0xff] %v819
        %828 = vst [vmem:[#allocation2 + $0x10] sm:$0xff] %v820
        %829 = vst [vmem:[#allocation2 + $0x18] sm:$0xff] %v821
        %830 = vst [vmem:[#allocation2 + $0x20] sm:$0xff] %v822
        %831 = vst [vmem:[#allocation2 + $0x28] sm:$0xff] %v823
        %832 = vst [vmem:[#allocation2 + $0x30] sm:$0xff] %v824
        %833 = vst [vmem:[#allocation2 + $0x38] sm:$0xff] %v825
        // Predicated region
        $region57: #{tpu_custom_call.1} parent=39 // pred_check
          %p834 = pneg %p324
        $region58: #{tpu_custom_call.1} parent=39 // pred_check_branch
          %836 = sbr.rel (%p834) target = $region60
        $region59: #{tpu_custom_call.1} parent=39 // pred_region
          %v837 = vld [vmem:[#allocation2] sm:$0xff]
          %v838 = vld [vmem:[#allocation2 + $0x8] sm:$0xff]
          %v839 = vld [vmem:[#allocation2 + $0x10] sm:$0xff]
          %v840 = vld [vmem:[#allocation2 + $0x18] sm:$0xff]
          %v841 = vld [vmem:[#allocation2 + $0x20] sm:$0xff]
          %v842 = vld [vmem:[#allocation2 + $0x28] sm:$0xff]
          %v843 = vld [vmem:[#allocation2 + $0x30] sm:$0xff]
          %v844 = vld [vmem:[#allocation2 + $0x38] sm:$0xff]
          %v845 = vld [vmem:[%s4] sm:$0x1]
          %v847 = vlaneseq
          %v848 = vshrl.u32 %v847, 7
          %v849 = vsub.s32 0, %v848
          %v850 = vrot.slane %v845, %v849
          %v852 = vadd.f32 %v837, %v850
          %v853 = vadd.f32 %v838, %v850
          %v854 = vadd.f32 %v839, %v850
          %v855 = vadd.f32 %v840, %v850
          %v856 = vadd.f32 %v841, %v850
          %v857 = vadd.f32 %v842, %v850
          %v858 = vadd.f32 %v843, %v850
          %v859 = vadd.f32 %v844, %v850
          %860 = vst [vmem:[%s313] sm:$0xff] %v852
          %861 = vst [vmem:[%s313 + $0x8] sm:$0xff] %v853
          %862 = vst [vmem:[%s313 + $0x10] sm:$0xff] %v854
          %863 = vst [vmem:[%s313 + $0x18] sm:$0xff] %v855
          %864 = vst [vmem:[%s313 + $0x20] sm:$0xff] %v856
          %865 = vst [vmem:[%s313 + $0x28] sm:$0xff] %v857
          %866 = vst [vmem:[%s313 + $0x30] sm:$0xff] %v858
          %867 = vst [vmem:[%s313 + $0x38] sm:$0xff] %v859
        $region60: #{tpu_custom_call.1} parent=39 // pred_fallthru
          _
        %s868 = sand.u32 %s168, 1
        %s869 = scalar_lea.sflag [#allocation5], %s868
        %s870 = sand.u32 %s168, 1
        %s871 = smul.addr %s870, 64
        %s872 = scalar_lea.vmem [#allocation9], %s871
        // Predicated region
        $region61: #{tpu_custom_call.1} parent=39 // pred_check
          %p873 = pneg %p178
        $region62: #{tpu_custom_call.1} parent=39 // pred_check_branch
          %875 = sbr.rel (%p873) target = $region64
        $region63: #{tpu_custom_call.1} parent=39 // pred_region
          %s876 = smul.u32 8, %s27
          %s878 = ssub.s32 1024, 1024
          %879 = vsyncadd %s869, %s878
          %s880 = smul.addr %s876, 128
          %s881 = scalar_lea.hbm %s5, %s880
          %s882 = sshll.u32 %s872, 4
          %s883 = int_to_ptr.vmem [resolvable:$true] %s882
          %888 = dma.vmem_to_hbm [thread:$0]  %s883, 1024, %s881, %s869, 128, 128, 8
        $region64: #{tpu_custom_call.1} parent=39 // pred_fallthru
          _
      $region40: #{tpu_custom_call.1} parent=5 // pred_fallthru
        _
      %p889 = scmp.le.s32.totalorder 2, %s18
      // Predicated region
      $region65: #{tpu_custom_call.1} parent=5 // pred_check
        %p890 = pneg %p889
      $region66: #{tpu_custom_call.1} parent=5 // pred_check_branch
        %892 = sbr.rel (%p890) target = $region68
      $region67: #{tpu_custom_call.1} parent=5 // pred_region
        %s893 = ssub.s32 %s18, 2
        // Predicated region
        $region69: #{tpu_custom_call.1} parent=67 // pred_check
          %p894 = pneg %p184
        $region70: #{tpu_custom_call.1} parent=67 // pred_check_branch
          %896 = sbr.rel (%p894) target = $region72
        $region71: #{tpu_custom_call.1} parent=67 // pred_region
          %s897 = sand.u32 %s169, 1
          %s898 = scalar_lea.sflag [#allocation5], %s897
          %s899 = sand.u32 %s169, 1
          %s900 = smul.addr %s899, 64
          %s901 = scalar_lea.vmem [#allocation9], %s900
          %902 = dma.done %s898, 1024
        $region72: #{tpu_custom_call.1} parent=67 // pred_fallthru
          _
      $region68: #{tpu_custom_call.1} parent=5 // pred_fallthru
        _
    $region6: #{tpu_custom_call.1} parent=1 // loop_footer
      %s22 = sadd.s32 1, %s18
    $region7: #{tpu_custom_call.1} parent=1 // loop_footer_branch
      %17 = sbr.rel target = $region3
    $region8: #{tpu_custom_call.1} parent=1 // loop_exit
      _
    %903 = vsyncpa [#allocation4], 1
    %s904 = scalar_lea.sflag [#allocation4], 1
    %905 = vsyncpa %s904, 1
    %906 = vsyncpa [#allocation7], 1
    %907 = vsyncpa [#allocation5], 1
    %s908 = scalar_lea.sflag [#allocation5], 1
    %909 = vsyncpa %s908, 1

</llo_original>
